<compile_context>
chip_gen: v7x
topology: tpu7x:2x2x1
jax: 0.10.0
libtpu: 0.0.40
codegen_flags: <defaults>
</compile_context>

<pallas_src>
import jax
import jax.numpy as jnp
from jax.experimental import pallas as pl
from jax.experimental.pallas import tpu as pltpu

BN_EPS = 1e-5


def _vmem_spec():
    # Whole array resident in VMEM (no grid / no pipelining at these sizes).
    return pl.BlockSpec(memory_space=pltpu.MemorySpace.VMEM)


# --------------------------------------------------------------------------
# pltpu.roll convention probe (run once at build time)
# --------------------------------------------------------------------------
def _probe_roll_is_jnp_like():
    """True iff pltpu.roll(x, s, axis)[i] == x[(i - s) % n] (jnp.roll-like)."""

    def k(x_ref, o_ref):
        o_ref[...] = pltpu.roll(x_ref[...], shift=1, axis=1)

    x = jnp.arange(128, dtype=jnp.float32).reshape(1, 128)
    y = pl.pallas_call(
        k,
        out_shape=jax.ShapeDtypeStruct((1, 128), jnp.float32),
        in_specs=[_vmem_spec()],
        out_specs=_vmem_spec(),
    )(x)
    return bool(jax.block_until_ready(y)[0, 0] == 127.0)


def _shift_lanes(x, s, size, roll_is_jnp_like):
    """result[..., i] = x[..., (i + s) % size] for a static python int s."""
    s = s % size
    if s == 0:
        return x
    amount = (size - s) if roll_is_jnp_like else s
    return pltpu.roll(x, shift=amount, axis=1)


# --------------------------------------------------------------------------
# One DownBlock, traced inside the fused kernel
# --------------------------------------------------------------------------
def _conv_relu_bn_pool(x, w, b, sel, *, N, H, W, Cin, Cout, roll_is_jnp_like):
    """x: (Cin, N*H*W) lane-dense -> (Cout, N*(H//2)*(W//2)).

    w:   (Cout, 9*Cin)  column j = (ky*3+kx)*Cin + ci
    b:   (Cout, 1)
    sel: (N*H*W, N*(H//2)*(W//2)) constant 0/1 pool-compaction matrix
    """
    NHW = N * H * W
    lane = jax.lax.broadcasted_iota(jnp.int32, (1, NHW), 1)
    col = lane % W
    row = (lane // W) % H

    # 3x3 'same' conv + bias as 9*Cin broadcast multiply-accumulates (VPU);
    # taps are built from masked XLU lane rotations of the whole feature map.
    y = jnp.zeros((Cout, NHW), jnp.float32) + b
    for ky in range(3):
        dy = ky - 1
        for kx in range(3):
            dx = kx - 1
            shifted = _shift_lanes(x, dy * W + dx, NHW, roll_is_jnp_like)
            valid = ((row + dy >= 0) & (row + dy < H)
                     & (col + dx >= 0) & (col + dx < W))
            tap = jnp.where(valid, shifted, 0.0)          # (Cin, NHW)
            for ci in range(Cin):
                j = (ky * 3 + kx) * Cin + ci
                y = y + w[:, j:j + 1] * tap[ci:ci + 1, :]

    y = jnp.maximum(y, 0.0)  # ReLU

    # BatchNorm2d, training-mode stats over (N, H, W), biased variance,
    # gamma=1 / beta=0 (LocNet only re-initializes conv layers).  Centered
    # second moment avoids the E[y^2] - mean^2 cancellation issue.
    inv_n = 1.0 / float(NHW)
    mean = jnp.sum(y, axis=1, keepdims=True) * inv_n
    yc = y - mean
    var = jnp.sum(yc * yc, axis=1, keepdims=True) * inv_n
    yn = yc * jax.lax.rsqrt(var + BN_EPS)

    # 2x2 / stride-2 max-pool applied AFTER BN, exactly like the module order
    # (conv -> act -> norm -> pool).  Window max via two lane shifts; the
    # garbage values produced at odd rows/cols never reach the selected lanes.
    t = jnp.maximum(yn, _shift_lanes(yn, 1, NHW, roll_is_jnp_like))
    t = jnp.maximum(t, _shift_lanes(t, W, NHW, roll_is_jnp_like))
    # Compact the even-(h, w) lanes with a constant 0/1 selection matmul.
    return jnp.dot(t, sel, preferred_element_type=jnp.float32)


# --------------------------------------------------------------------------
# Fused whole-network kernel factory
# --------------------------------------------------------------------------
def _make_locnet_kernel(*, batch, image_size, channels, roll_is_jnp_like):
    n_blocks = len(channels) - 1
    sizes = [image_size // (2 ** i) for i in range(n_blocks + 1)]
    s_last = sizes[-1] * sizes[-1]
    c_last = channels[-1]

    def kernel(*refs):
        # refs = x, (w, b, sel) per block, fc1 w/b, fc2 w/b, fc3 w/b, out, scratch
        feat = refs[0][...]
        idx = 1
        for blk in range(n_blocks):
            w_ref, b_ref, sel_ref = refs[idx], refs[idx + 1], refs[idx + 2]
            idx += 3
            feat = _conv_relu_bn_pool(
                feat, w_ref[...], b_ref[...], sel_ref[...],
                N=batch, H=sizes[blk], W=sizes[blk],
                Cin=channels[blk], Cout=channels[blk + 1],
                roll_is_jnp_like=roll_is_jnp_like)

        fw1, fb1, fw2, fb2, fw3, fb3 = refs[idx:idx + 6]
        o_ref = refs[idx + 6]
        mlp_ref = refs[idx + 7]

        # Reorder (C_last, batch*S) -> (batch, C_last*S) so the MLP consumes
        # features in torch's NCHW x.view(-1, n_nodes) order; a few tiny
        # in-VMEM slice copies replace the old XLA transpose.
        for n in range(batch):
            for c in range(c_last):
                mlp_ref[pl.ds(n, 1), pl.ds(c * s_last, s_last)] = (
                    feat[c:c + 1, n * s_last:(n + 1) * s_last])

        xm = mlp_ref[...]
        h = jnp.dot(xm, fw1[...], preferred_element_type=jnp.float32) + fb1[...]
        h = jnp.maximum(h, 0.0)
        h = jnp.dot(h, fw2[...], preferred_element_type=jnp.float32) + fb2[...]
        h = jnp.maximum(h, 0.0)
        z = jnp.dot(h, fw3[...], preferred_element_type=jnp.float32) + fb3[...]
        o_ref[...] = 1.0 / (1.0 + jnp.exp(-z))

    return kernel


# --------------------------------------------------------------------------
# Host-side constant builders + forward wrapper
# --------------------------------------------------------------------------
def _pool_selector(batch, H, W):
    """0/1 matrix compacting even-(h,w) lanes: (batch*H*W, batch*Ho*Wo)."""
    Ho, Wo = H // 2, W // 2
    f = jnp.arange(batch * H * W)
    n = f // (H * W)
    h = (f // W) % H
    w = f % W
    tgt = n * (Ho * Wo) + (h // 2) * Wo + (w // 2)
    keep = (h % 2 == 0) & (w % 2 == 0)
    g = jnp.arange(batch * Ho * Wo)
    sel = keep[:, None] & (g[None, :] == tgt[:, None])
    return sel.astype(jnp.float32)


def build_locnet_forward(conv_params, fc_params, *, batch, in_channels,
                         image_size):
    roll_is_jnp_like = _probe_roll_is_jnp_like()

    channels = [in_channels] + [int(w.shape[-1]) for (w, _) in conv_params]
    kernel = _make_locnet_kernel(batch=batch, image_size=image_size,
                                 channels=channels,
                                 roll_is_jnp_like=roll_is_jnp_like)

    const_inputs = []
    H = image_size
    cin = in_channels
    for (w, b) in conv_params:
        cout = int(w.shape[-1])
        # (3,3,Cin,Cout) HWIO -> (Cout, 9*Cin); column j = (ky*3+kx)*Cin + ci.
        const_inputs.append(jnp.asarray(w, jnp.float32).reshape(9 * cin, cout).T)
        const_inputs.append(jnp.asarray(b, jnp.float32).reshape(cout, 1))
        const_inputs.append(_pool_selector(batch, H, H))
        H //= 2
        cin = cout
    for (fw, fb) in fc_params:
        const_inputs.append(jnp.asarray(fw, jnp.float32))
        const_inputs.append(jnp.asarray(fb, jnp.float32).reshape(1, -1))

    n_nodes = cin * H * H
    out_dim = int(fc_params[-1][0].shape[1])

    @jax.jit
    def forward(x_nchw):
        # NCHW -> (Cin, N*H*W) lane-dense (raster order n, h, w on lanes).
        x2d = jnp.transpose(x_nchw, (1, 0, 2, 3)).reshape(in_channels, -1)
        x2d = x2d.astype(jnp.float32)
        return pl.pallas_call(
            kernel,
            out_shape=jax.ShapeDtypeStruct((batch, out_dim), jnp.float32),
            in_specs=[_vmem_spec()] * (1 + len(const_inputs)),
            out_specs=_vmem_spec(),
            scratch_shapes=[pltpu.VMEM((batch, n_nodes), jnp.float32)],
        )(x2d, *const_inputs)

    return forward, n_nodes


# --------------------------------------------------------------------------
# Parameter init (matches LocNet.initialize_parameters / nn.Linear defaults)
# --------------------------------------------------------------------------
def init_params(key, in_channels, n_blocks, start_filters, input_image_size, dim):
    conv_params = []
    cin = in_channels
    for i in range(n_blocks):
        cout = start_filters * (2 ** i)
        key, kw = jax.random.split(key)
        fan_in = 3 * 3 * cin
        fan_out = 3 * 3 * cout
        limit = (6.0 / (fan_in + fan_out)) ** 0.5      # xavier_uniform_
        w = jax.random.uniform(kw, (3, 3, cin, cout), jnp.float32, -limit, limit)
        b = jnp.zeros((cout,), jnp.float32)            # zeros_
        conv_params.append((w, b))
        cin = cout

    size = input_image_size // (2 ** n_blocks)
    n_nodes = cin * size ** dim
    fc_dims = [(n_nodes, 120), (120, 84), (84, dim * 2)]
    fc_params = []
    for (fi, fo) in fc_dims:
        key, kw, kb = jax.random.split(key, 3)
        lim = (1.0 / fi) ** 0.5                        # nn.Linear default init
        w = jax.random.uniform(kw, (fi, fo), jnp.float32, -lim, lim)
        b = jax.random.uniform(kb, (fo,), jnp.float32, -lim, lim)
        fc_params.append((w, b))
    return conv_params, fc_params, n_nodes


# --------------------------------------------------------------------------
# Main
# --------------------------------------------------------------------------
if __name__ == "__main__":
    IN_CHANNELS = 1
    N_BLOCKS = 2
    START_FILTERS = 4
    IMAGE_SIZE = 16
    DIM = 2
    BATCH = 2

    key = jax.random.PRNGKey(0)
    key, kparams, kx = jax.random.split(key, 3)
    conv_params, fc_params, n_nodes = init_params(
        kparams, IN_CHANNELS, N_BLOCKS, START_FILTERS, IMAGE_SIZE, DIM)
    x = jax.random.normal(kx, (BATCH, IN_CHANNELS, IMAGE_SIZE, IMAGE_SIZE),
                          jnp.float32)

    forward, n_nodes_k = build_locnet_forward(
        conv_params, fc_params, batch=BATCH, in_channels=IN_CHANNELS,
        image_size=IMAGE_SIZE)
    assert n_nodes_k == n_nodes, (n_nodes_k, n_nodes)

    out = jax.block_until_ready(forward(x))

    assert out.shape == (BATCH, DIM * 2), out.shape
    assert bool(jnp.all((out >= 0.0) & (out <= 1.0))), "sigmoid output out of range"
    assert bool(jnp.all(jnp.isfinite(out))), "non-finite output"
    print("KERNEL_OK")
</pallas_src>

<mosaic_0001>
module attributes {stable_mosaic.version = 11 : i64} {
  func.func @k(%arg0: memref<1x128xf32, #tpu.memory_space<vmem>>, %arg1: memref<1x128xf32, #tpu.memory_space<vmem>>) attributes {dimension_semantics = [], scalar_prefetch = 0 : i64, scratch_operands = 0 : i64, tpu.core_type = #tpu.core_type<tc>} {
    %c0 = arith.constant 0 : index
    %c0_0 = arith.constant 0 : index
    %0 = vector.load %arg0[%c0, %c0_0] : memref<1x128xf32, #tpu.memory_space<vmem>>, vector<1x128xf32>
    %c1_i32 = arith.constant 1 : i32
    %1 = tpu.dynamic_rotate %0 by %c1_i32 dim 1 : vector<1x128xf32>, i32 -> vector<1x128xf32>
    %c0_1 = arith.constant 0 : index
    %c0_2 = arith.constant 0 : index
    %2 = vector.load %arg1[%c0_1, %c0_2] : memref<1x128xf32, #tpu.memory_space<vmem>>, vector<1x128xf32>
    tpu.vector_store %arg1[%c0_1, %c0_2], %1 {strides = array<i32>} : memref<1x128xf32, #tpu.memory_space<vmem>>, vector<1x128xf32>,
    return
  }
}

</mosaic_0001>

<llo_original>
// kernel: tpu_custom_call.1
$region0: #{tpu_custom_call.1}
  #allocation0 [shape = 'u32[]', space=smem, size = 0x4, offset = 0x4, fixed_abs, tag = 'smem constant byte address 0x4 - core index']
  #allocation1 [shape = 'u32[144,128]{1,0:T(1,128)}', space=vmem, size = 0x12000, scoped, tag = 'internal scratch']
  %s0 = inlined_call_operand.hbm [shape: f32[1,128], index: 0, kind: input, shape index: {}]
  %s1 = inlined_call_operand.hbm [shape: f32[1,128], index: 1, kind: output, shape index: {}]
  %s2 = sld [smem:[#allocation0]]
  $region18: #{tpu_custom_call.1} parent=0
    _
  %s4 = ssub.s32 1, %s2
  %s5 = scalar_select 0, %s4, %s2
  $region1: #{tpu_custom_call.1} parent=0
    #allocation2 [shape = 'u8[512]{0}', space=vmem, size = 0x400, scoped, tag = 'input window, operand 0, single buffered']
    #allocation3 [shape = 's32[1]{0}', space=sflag, size = 0x4, scoped, tag = 'scoped memory for tpu_custom_call.1']
    #allocation4 [shape = 's32[1]{0}', space=sflag, size = 0x4, scoped, tag = 'scoped memory for tpu_custom_call.1']
    #allocation5 [shape = 'u8[512]{0}', space=vmem, size = 0x400, scoped, tag = 'output window, operand 0, single buffered']
    %6 = vsyncpa [#allocation3], 0
    %7 = vsyncpa [#allocation4], 0
    // Predicated region
    $region2: #{tpu_custom_call.1} parent=1 // pred_check
      _
    $region3: #{tpu_custom_call.1} parent=1 // pred_check_branch
      %9 = sbr.rel (0) target = $region5
    $region4: #{tpu_custom_call.1} parent=1 // pred_region
      %s11 = ssub.s32 16, 16
      %12 = vsyncadd [#allocation3], %s11
      %s14 = sshll.u32 [#allocation2], 4
      %s15 = int_to_ptr.vmem [resolvable:$true] %s14
      %17 = dma.hbm_to_vmem [thread:$0]  %s0, 16, %s15, [#allocation3]
    $region5: #{tpu_custom_call.1} parent=1 // pred_fallthru
      _
    // Predicated region
    $region6: #{tpu_custom_call.1} parent=1 // pred_check
      _
    $region7: #{tpu_custom_call.1} parent=1 // pred_check_branch
      %19 = sbr.rel (0) target = $region9
    $region8: #{tpu_custom_call.1} parent=1 // pred_region
      %20 = dma.done [#allocation3], 16
    $region9: #{tpu_custom_call.1} parent=1 // pred_fallthru
      _
    %v21 = vld [vmem:[#allocation2] sm:$0x1]
    %22 = vrot.lane.b32.xlu0 %v21, 1
    %v23 = vpop.permute.xlu0 %22
    %24 = vst [vmem:[#allocation5] sm:$0x1] %v23
    // Predicated region
    $region10: #{tpu_custom_call.1} parent=1 // pred_check
      _
    $region11: #{tpu_custom_call.1} parent=1 // pred_check_branch
      %26 = sbr.rel (0) target = $region13
    $region12: #{tpu_custom_call.1} parent=1 // pred_region
      %s28 = ssub.s32 16, 16
      %29 = vsyncadd [#allocation4], %s28
      %s31 = sshll.u32 [#allocation5], 4
      %s32 = int_to_ptr.vmem [resolvable:$true] %s31
      %34 = dma.vmem_to_hbm [thread:$0]  %s32, 16, %s1, [#allocation4]
    $region13: #{tpu_custom_call.1} parent=1 // pred_fallthru
      _
    // Predicated region
    $region14: #{tpu_custom_call.1} parent=1 // pred_check
      _
    $region15: #{tpu_custom_call.1} parent=1 // pred_check_branch
      %36 = sbr.rel (0) target = $region17
    $region16: #{tpu_custom_call.1} parent=1 // pred_region
      %37 = dma.done [#allocation4], 16
    $region17: #{tpu_custom_call.1} parent=1 // pred_fallthru
      _
    %38 = vsyncpa [#allocation3], 1
    %39 = vsyncpa [#allocation4], 1

</llo_original>
